<compile_context>
chip_gen: v7x
topology: tpu7x:2x2x1
jax: 0.10.0
libtpu: 0.0.40
codegen_flags: <defaults>
</compile_context>

<pallas_src>
import functools

import jax
import jax.numpy as jnp
from jax.experimental import pallas as pl
from jax.experimental.pallas import tpu as pltpu


def _mean_kernel(x_ref, o_ref, *scratch, inv_n):
    """Sum TN reduction slices per grid step into a resident accumulator."""
    nb = pl.program_id(2)                       # reduction axis (last, arbitrary)
    # f32 outputs: accumulate directly into the resident output block (saves
    # the scratch buffer and the final full-tile copy).  Otherwise use the
    # f32 VMEM scratch and cast on the last step.
    acc_ref = scratch[0] if scratch else o_ref

    @pl.when(nb == 0)
    def _():
        acc_ref[...] = jnp.zeros_like(acc_ref)

    # x_ref block is (TN, TR, 128): fold all TN reduction slices in one pass.
    acc_ref[...] += jnp.sum(x_ref[...].astype(jnp.float32), axis=0)

    @pl.when(nb == pl.num_programs(2) - 1)
    def _():
        # n is static -> multiply by the precomputed 1/n instead of dividing.
        o_ref[...] = (acc_ref[...] * jnp.float32(inv_n)).astype(o_ref.dtype)


def _largest_divisor_leq(n, cap):
    for d in range(min(cap, n), 0, -1):
        if n % d == 0:
            return d
    return 1


@jax.jit
def mean_aggregator(x):
    """Equivalent of torch.mean(x, dim=-4) implemented with a Pallas kernel."""
    assert x.ndim >= 4, "MeanAggregator expects rank >= 4 input (dim=-4)."
    red_axis = x.ndim - 4
    out_shape = x.shape[:red_axis] + x.shape[red_axis + 1:]

    lead = 1
    for d in x.shape[:red_axis]:
        lead *= d
    n = x.shape[red_axis]
    t = 1
    for d in x.shape[red_axis + 1:]:
        t *= d

    lane = 128
    # (L, N, T) is a contiguous view of the original layout: no moveaxis /
    # HBM transpose even for rank > 4 inputs (leading dims become a grid axis).
    x3 = x.reshape(lead, n, t)
    t_pad = pl.cdiv(t, lane) * lane
    if t_pad != t:
        # Fallback only: trailing dims not 128-aligned (extra HBM pass).
        # 128-aligned C*H*W skips this entirely.
        x3 = jnp.pad(x3, ((0, 0), (0, 0), (0, t_pad - t)))
    r = t_pad // lane
    x4 = x3.reshape(lead, n, r, lane)

    # Reduction-axis blocking: fold up to 8 N-slices per grid step.  TN must
    # divide N so no N-padding or tail masking is needed (prime N > 8 falls
    # back to TN=1, which is still correct).
    tn = _largest_divisor_leq(n, 8)
    n_tiles = n // tn

    # Row tiling: ~2 MiB per (double-buffered) input block, multiple of 8,
    # capped at 2048 rows.  Keeps the full working set well inside the scoped
    # VMEM default on every generation (16 MiB v5e / 32 MiB v6e-v7x).
    itemsize = jnp.dtype(x.dtype).itemsize
    tr = (2 * 1024 * 1024) // (tn * lane * itemsize)
    tr = max(8, min(2048, tr))
    tr = (tr // 8) * 8
    if tr >= r:
        tr = r
    r_tiles = pl.cdiv(r, tr)

    out_is_f32 = jnp.dtype(x.dtype) == jnp.float32
    scratch_shapes = [] if out_is_f32 else [pltpu.VMEM((tr, lane), jnp.float32)]

    kernel = functools.partial(_mean_kernel, inv_n=float(1.0 / n))

    out = pl.pallas_call(
        kernel,
        out_shape=jax.ShapeDtypeStruct((lead, r, lane), x.dtype),
        grid_spec=pltpu.PrefetchScalarGridSpec(
            num_scalar_prefetch=0,
            grid=(lead, r_tiles, n_tiles),
            in_specs=[
                pl.BlockSpec(
                    (pl.Squeezed(), tn, tr, lane),
                    lambda l, rb, nb: (l, nb, rb, 0),
                ),
            ],
            out_specs=pl.BlockSpec(
                (pl.Squeezed(), tr, lane),
                lambda l, rb, nb: (l, rb, 0),
            ),
            scratch_shapes=scratch_shapes,
        ),
        compiler_params=pltpu.CompilerParams(
            # Output-tile axes parallel (shards across v7x's 2 TCs), reduction
            # axis last and arbitrary (accumulator pattern).
            dimension_semantics=("parallel", "parallel", "arbitrary"),
            vmem_limit_bytes=32 * 1024 * 1024,
        ),
    )(x4)

    if t_pad != t:
        out = out.reshape(lead, t_pad)[:, :t]
    return out.reshape(out_shape)


if __name__ == "__main__":
    key = jax.random.PRNGKey(0)
    k0, k1, k2, k3 = jax.random.split(key, 4)

    # Main check: NCHW input N=2, C=4, H=W=16 -> output (4, 16, 16).
    x = jax.random.normal(k0, (2, 4, 16, 16), dtype=jnp.float32)
    y = jax.block_until_ready(mean_aggregator(x))
    y_ref = jnp.mean(x, axis=-4)
    assert y.shape == y_ref.shape, (y.shape, y_ref.shape)
    assert jnp.allclose(y, y_ref, atol=1e-6, rtol=1e-6)

    # Rank-5 input (leading batch dim becomes a parallel grid axis, no transpose).
    x5 = jax.random.normal(k1, (3, 2, 4, 16, 16), dtype=jnp.float32)
    y5 = jax.block_until_ready(mean_aggregator(x5))
    assert jnp.allclose(y5, jnp.mean(x5, axis=-4), atol=1e-6, rtol=1e-6)

    # Non-128-aligned trailing dims (exercises the lane-pad fallback path).
    xp = jax.random.normal(k2, (2, 4, 10, 10), dtype=jnp.float32)
    yp = jax.block_until_ready(mean_aggregator(xp))
    assert jnp.allclose(yp, jnp.mean(xp, axis=-4), atol=1e-6, rtol=1e-6)

    # Low-precision input (exercises the f32 scratch-accumulator path).
    xb = jax.random.normal(k3, (4, 4, 16, 16), dtype=jnp.bfloat16)
    yb = jax.block_until_ready(mean_aggregator(xb))
    yb_ref = jnp.mean(xb.astype(jnp.float32), axis=-4).astype(jnp.bfloat16)
    assert jnp.allclose(yb.astype(jnp.float32), yb_ref.astype(jnp.float32),
                        atol=2e-2, rtol=2e-2)

    print("KERNEL_OK")
</pallas_src>

<mosaic_0001>
module attributes {stable_mosaic.version = 11 : i64} {
  func.func @_mean_kernel(%arg0: i32, %arg1: i32, %arg2: i32, %arg3: memref<1x2x8x128xf32, #tpu.memory_space<vmem>>, %arg4: memref<1x8x128xf32, #tpu.memory_space<vmem>>) attributes {dimension_semantics = [#tpu.dimension_semantics<parallel>, #tpu.dimension_semantics<parallel>, #tpu.dimension_semantics<arbitrary>], iteration_bounds = array<i64: 1, 1, 1>, scalar_prefetch = 0 : i64, scratch_operands = 0 : i64, tpu.core_type = #tpu.core_type<tc>, window_params = [{transform_indices = @transform_0, window_bounds = array<i64: 1, 2, 8, 128>}, {transform_indices = @transform_1, window_bounds = array<i64: 1, 8, 128>}]} {
    %c0_i32 = arith.constant 0 : i32
    %0 = arith.cmpi eq, %arg2, %c0_i32 : i32
    %1 = arith.extui %0 : i1 to i32
    %c0_i32_0 = arith.constant 0 : i32
    %2 = arith.cmpi ne, %1, %c0_i32_0 : i32
    scf.if %2 {
      %cst_12 = arith.constant 0.000000e+00 : f32
      %15 = vector.broadcast %cst_12 : f32 to vector<8x128xf32>
      %c0_13 = arith.constant 0 : index
      %c0_14 = arith.constant 0 : index
      %c0_15 = arith.constant 0 : index
      %16 = vector.load %arg4[%c0_13, %c0_14, %c0_15] : memref<1x8x128xf32, #tpu.memory_space<vmem>>, vector<1x8x128xf32>
      %17 = vector.shape_cast %16 : vector<1x8x128xf32> to vector<8x128xf32>
      %18 = vector.shape_cast %15 : vector<8x128xf32> to vector<1x8x128xf32>
      tpu.vector_store %arg4[%c0_13, %c0_14, %c0_15], %18 {strides = array<i32>} : memref<1x8x128xf32, #tpu.memory_space<vmem>>, vector<1x8x128xf32>,
    } else {
    }
    %c0 = arith.constant 0 : index
    %c0_1 = arith.constant 0 : index
    %c0_2 = arith.constant 0 : index
    %3 = vector.load %arg4[%c0, %c0_1, %c0_2] : memref<1x8x128xf32, #tpu.memory_space<vmem>>, vector<1x8x128xf32>
    %4 = vector.shape_cast %3 : vector<1x8x128xf32> to vector<8x128xf32>
    %c0_3 = arith.constant 0 : index
    %c0_4 = arith.constant 0 : index
    %c0_5 = arith.constant 0 : index
    %c0_6 = arith.constant 0 : index
    %5 = vector.load %arg3[%c0_3, %c0_4, %c0_5, %c0_6] : memref<1x2x8x128xf32, #tpu.memory_space<vmem>>, vector<1x2x8x128xf32>
    %6 = vector.shape_cast %5 : vector<1x2x8x128xf32> to vector<2x8x128xf32>
    %cst = arith.constant dense<0.000000e+00> : vector<8x128xf32>
    %7 = vector.multi_reduction <add>, %6, %cst [0] : vector<2x8x128xf32> to vector<8x128xf32>
    %8 = arith.addf %4, %7 : vector<8x128xf32>
    %c0_7 = arith.constant 0 : index
    %c0_8 = arith.constant 0 : index
    %c0_9 = arith.constant 0 : index
    %9 = vector.load %arg4[%c0_7, %c0_8, %c0_9] : memref<1x8x128xf32, #tpu.memory_space<vmem>>, vector<1x8x128xf32>
    %10 = vector.shape_cast %9 : vector<1x8x128xf32> to vector<8x128xf32>
    %11 = vector.shape_cast %8 : vector<8x128xf32> to vector<1x8x128xf32>
    tpu.vector_store %arg4[%c0_7, %c0_8, %c0_9], %11 {strides = array<i32>} : memref<1x8x128xf32, #tpu.memory_space<vmem>>, vector<1x8x128xf32>,
    %c0_i32_10 = arith.constant 0 : i32
    %12 = arith.cmpi eq, %arg2, %c0_i32_10 : i32
    %13 = arith.extui %12 : i1 to i32
    %c0_i32_11 = arith.constant 0 : i32
    %14 = arith.cmpi ne, %13, %c0_i32_11 : i32
    scf.if %14 {
      %c0_12 = arith.constant 0 : index
      %c0_13 = arith.constant 0 : index
      %c0_14 = arith.constant 0 : index
      %15 = vector.load %arg4[%c0_12, %c0_13, %c0_14] : memref<1x8x128xf32, #tpu.memory_space<vmem>>, vector<1x8x128xf32>
      %16 = vector.shape_cast %15 : vector<1x8x128xf32> to vector<8x128xf32>
      %cst_15 = arith.constant 5.000000e-01 : f32
      %17 = vector.broadcast %cst_15 : f32 to vector<8x128xf32>
      %18 = arith.mulf %16, %17 : vector<8x128xf32>
      %c0_16 = arith.constant 0 : index
      %c0_17 = arith.constant 0 : index
      %c0_18 = arith.constant 0 : index
      %19 = vector.load %arg4[%c0_16, %c0_17, %c0_18] : memref<1x8x128xf32, #tpu.memory_space<vmem>>, vector<1x8x128xf32>
      %20 = vector.shape_cast %19 : vector<1x8x128xf32> to vector<8x128xf32>
      %21 = vector.shape_cast %18 : vector<8x128xf32> to vector<1x8x128xf32>
      tpu.vector_store %arg4[%c0_16, %c0_17, %c0_18], %21 {strides = array<i32>} : memref<1x8x128xf32, #tpu.memory_space<vmem>>, vector<1x8x128xf32>,
    } else {
    }
    return
  }
  func.func @transform_0(%arg0: i32, %arg1: i32, %arg2: i32) -> (i32, i32, i32, i32) {
    %c0_i32 = arith.constant 0 : i32
    %c0_i32_0 = arith.constant 0 : i32
    return %arg0, %arg2, %arg1, %c0_i32 : i32, i32, i32, i32
  }
  func.func @transform_1(%arg0: i32, %arg1: i32, %arg2: i32) -> (i32, i32, i32) {
    %c0_i32 = arith.constant 0 : i32
    %c0_i32_0 = arith.constant 0 : i32
    return %arg0, %arg1, %c0_i32 : i32, i32, i32
  }
}

</mosaic_0001>

<llo_original>
// kernel: mean_aggregator.1
$region0: #{mean_aggregator.1}
  #allocation0 [shape = 'u32[]', space=smem, size = 0x4, offset = 0x4, fixed_abs, tag = 'smem constant byte address 0x4 - core index']
  #allocation1 [shape = 'u32[144,128]{1,0:T(1,128)}', space=vmem, size = 0x12000, scoped, tag = 'internal scratch']
  %s0 = inlined_call_operand.vmem [shape: f32[1,2,8,128], index: 0, kind: input, shape index: {}]
  %s1 = inlined_call_operand.vmem [shape: f32[1,8,128], index: 1, kind: output, shape index: {}]
  %s2 = sld [smem:[#allocation0]]
  $region22: #{mean_aggregator.1} parent=0
    _
  %s4 = ssub.s32 1, %s2
  %s5 = scalar_select 0, %s4, %s2
  // Predicated region
  $region2: #{mean_aggregator.1} parent=0 // pred_check
    _
  $region3: #{mean_aggregator.1} parent=0 // pred_check_branch
    %7 = sbr.rel (0) target = $region5
  $region4: #{mean_aggregator.1} parent=0 // pred_region
    _
  $region5: #{mean_aggregator.1} parent=0 // pred_fallthru
    _
  %p8 = scmp.eq.s32.totalorder 0, 0
  // Predicated region
  $region6: #{mean_aggregator.1} parent=0 // pred_check
    %p9 = pneg %p8
  $region7: #{mean_aggregator.1} parent=0 // pred_check_branch
    %11 = sbr.rel (%p9) target = $region9
  $region8: #{mean_aggregator.1} parent=0 // pred_region
    %12 = vst [vmem:[%s1] sm:$0xff] 0.0
  $region9: #{mean_aggregator.1} parent=0 // pred_fallthru
    _
  %v13 = vld [vmem:[%s1] sm:$0xff]
  %v14 = vld [vmem:[%s0] sm:$0xff]
  %v15 = vld [vmem:[%s0 + $0x8] sm:$0xff]
  %v16 = vadd.f32 %v14, %v15
  %v17 = vadd.f32 %v13, %v16
  %18 = vst [vmem:[%s1] sm:$0xff] %v17
  // Predicated region
  $region10: #{mean_aggregator.1} parent=0 // pred_check
    %p19 = pneg %p8
  $region11: #{mean_aggregator.1} parent=0 // pred_check_branch
    %21 = sbr.rel (%p19) target = $region13
  $region12: #{mean_aggregator.1} parent=0 // pred_region
    %v22 = vld [vmem:[%s1] sm:$0xff]
    %v23 = vmul.f32 %v22, 0.5
    %24 = vst [vmem:[%s1] sm:$0xff] %v23
  $region13: #{mean_aggregator.1} parent=0 // pred_fallthru
    _
  // Predicated region
  $region14: #{mean_aggregator.1} parent=0 // pred_check
    _
  $region15: #{mean_aggregator.1} parent=0 // pred_check_branch
    %26 = sbr.rel (0) target = $region17
  $region16: #{mean_aggregator.1} parent=0 // pred_region
    _
  $region17: #{mean_aggregator.1} parent=0 // pred_fallthru
    _
  // Predicated region
  $region18: #{mean_aggregator.1} parent=0 // pred_check
    _
  $region19: #{mean_aggregator.1} parent=0 // pred_check_branch
    %28 = sbr.rel (0) target = $region21
  $region20: #{mean_aggregator.1} parent=0 // pred_region
    _
  $region21: #{mean_aggregator.1} parent=0 // pred_fallthru
    _

</llo_original>
